<compile_context>
chip_gen: v7x
topology: tpu7x:2x2x1
jax: 0.10.0
libtpu: 0.0.40
codegen_flags: <defaults>
</compile_context>

<pallas_src>
import math

import jax
import jax.numpy as jnp
from jax.experimental import pallas as pl
from jax.experimental.pallas import tpu as pltpu

EPS = 1e-5  # Falcon layer_norm_epsilon


def _round_up(a, b):
    return (a + b - 1) // b * b


def _sublane_pack(dtype):
    # 8 rows/sublane-tile for f32, 16 for bf16, 32 for int8/fp8.
    return max(8, 32 // jnp.dtype(dtype).itemsize)


def _tpu_memory_config():
    """Returns (vmem_capacity_bytes, two_tensorcores) with a safe fallback."""
    try:
        cap = int(pltpu.get_tpu_info().vmem_capacity_bytes)
    except Exception:  # pragma: no cover - conservative fallback
        cap = 64 * 1024 * 1024
    # v7x has 64 MiB per-TC VMEM and 2 TensorCores/chip; v5e/v6e have 128 MiB
    # and a single TensorCore.
    two_tc = cap <= 80 * 1024 * 1024
    return cap, two_tc


def _budgets(vmem_cap):
    """(tile_budget_bytes, vmem_limit_bytes, max_tm) per generation."""
    if vmem_cap >= 128 * 1024 * 1024:   # v5e / v6e (128 MiB VMEM, 1 TC)
        return 80 << 20, 96 << 20, 1024
    return 36 << 20, 48 << 20, 512      # v7x (64 MiB VMEM, 2 TCs)


def _pick_tm(rows, H, dtype, vmem_cap, two_tc):
    """Largest sublane-aligned row tile that fits the generation's budget."""
    itemsize = jnp.dtype(dtype).itemsize
    pack = _sublane_pack(dtype)
    budget, _, max_tm = _budgets(vmem_cap)
    # Per-row VMEM: double-buffered input + output tiles plus ~2 f32 working
    # slabs (the in-kernel f32 upcast of x and one intermediate).
    per_row = 4 * H * itemsize + 8 * H
    tm = max(pack, (budget // per_row) // pack * pack)
    tm = min(tm, max_tm)
    tm = min(tm, _round_up(rows, pack))            # never bigger than needed
    if two_tc and rows > 4 * pack:
        # Shape the grid for v7x's 2 TensorCores: >=4 steps, even step count,
        # so both cores get balanced work and can still double-buffer.
        steps = pl.cdiv(rows, tm)
        if steps < 4 or steps % 2:
            steps = max(4, _round_up(steps, 2))
            tm = min(tm, _round_up(pl.cdiv(rows, steps), pack))
    return max(pack, (tm // pack) * pack)


def _layernorm_kernel(x_ref, g_ref, b_ref, o_ref):
    # x_ref: (tm, H) tile of rows; g_ref/b_ref: (1, H) full gamma/beta.
    # NOTE: in the last (partial) grid block the trailing rows are undefined;
    # their stats are garbage but their writes are masked by Pallas, and no
    # cross-row dependence exists, so valid output is unaffected.
    x = x_ref[...].astype(jnp.float32)
    inv_h = 1.0 / float(x.shape[-1])

    # One-pass statistics: the two reductions are independent (XLU), rsqrt
    # goes to the EUP. Clamp variance to guard f32 cancellation.
    s = jnp.sum(x, axis=-1, keepdims=True)
    ss = jnp.sum(x * x, axis=-1, keepdims=True)
    mean = s * inv_h
    var = jnp.maximum(ss * inv_h - mean * mean, 0.0)
    inv = jax.lax.rsqrt(var + EPS)

    gamma = g_ref[...].astype(jnp.float32)
    beta = b_ref[...].astype(jnp.float32)
    y = (x - mean) * inv * gamma + beta
    o_ref[...] = y.astype(o_ref.dtype)


def falcon_layernorm(x, gamma, beta, *, tm=None):
    """x: [..., H]; gamma, beta: [H]. Returns LayerNorm(x) over the last axis."""
    orig_shape = x.shape
    H = orig_shape[-1]
    rows = math.prod(orig_shape[:-1]) if len(orig_shape) > 1 else 1
    itemsize = jnp.dtype(x.dtype).itemsize

    vmem_cap, two_tc = _tpu_memory_config()
    _, vmem_limit, _ = _budgets(vmem_cap)
    if tm is None:
        tm = _pick_tm(rows, H, x.dtype, vmem_cap, two_tc)

    x2d = x.reshape(rows, H)
    g2d = gamma.reshape(1, H)
    b2d = beta.reshape(1, H)

    num_blocks = pl.cdiv(rows, tm)   # partial last block: reads undefined,
    grid = (num_blocks,)             # OOB writes masked -> no pad / slice pass

    param_bytes = (jnp.dtype(gamma.dtype).itemsize
                   + jnp.dtype(beta.dtype).itemsize) * H
    moved_rows = num_blocks * tm     # bytes the kernel actually moves
    cost = pl.CostEstimate(
        flops=9 * rows * H,
        transcendentals=rows,        # one rsqrt per row
        bytes_accessed=2 * moved_rows * H * itemsize + param_bytes,
    )

    out2d = pl.pallas_call(
        _layernorm_kernel,
        out_shape=jax.ShapeDtypeStruct((rows, H), x.dtype),
        grid_spec=pltpu.PrefetchScalarGridSpec(
            num_scalar_prefetch=0,
            grid=grid,
            in_specs=[
                pl.BlockSpec((tm, H), lambda i: (i, 0)),   # x row tile
                pl.BlockSpec((1, H), lambda i: (0, 0)),    # gamma (broadcast)
                pl.BlockSpec((1, H), lambda i: (0, 0)),    # beta  (broadcast)
            ],
            out_specs=pl.BlockSpec((tm, H), lambda i: (i, 0)),
        ),
        compiler_params=pltpu.CompilerParams(
            dimension_semantics=("parallel",),
            vmem_limit_bytes=vmem_limit,
        ),
        cost_estimate=cost,
    )(x2d, g2d, b2d)

    return out2d.reshape(orig_shape)


def falcon_layernorm_ref(x, gamma, beta):
    xf = x.astype(jnp.float32)
    mean = jnp.mean(xf, axis=-1, keepdims=True)
    var = jnp.mean((xf - mean) ** 2, axis=-1, keepdims=True)
    y = (xf - mean) * jax.lax.rsqrt(var + EPS) * gamma + beta
    return y.astype(x.dtype)


if __name__ == "__main__":
    key = jax.random.PRNGKey(0)
    kx, kg, kb, kx2, kx3 = jax.random.split(key, 5)

    # Small Falcon-shaped synthetic problem: batch=2, seq=32, hidden=128.
    B, S, H = 2, 32, 128
    x = jax.random.normal(kx, (B, S, H), dtype=jnp.float32)
    gamma = 1.0 + 0.02 * jax.random.normal(kg, (H,), dtype=jnp.float32)
    beta = 0.02 * jax.random.normal(kb, (H,), dtype=jnp.float32)

    out = jax.block_until_ready(falcon_layernorm(x, gamma, beta))
    ref = falcon_layernorm_ref(x, gamma, beta)
    assert out.shape == (B, S, H)
    assert jnp.allclose(out, ref, atol=1e-4, rtol=1e-4), "mismatch vs reference"

    # Non-tile-multiple row count exercises the masked partial-block path.
    x_odd = jax.random.normal(kx2, (1, 50, H), dtype=jnp.float32)
    out_odd = jax.block_until_ready(falcon_layernorm(x_odd, gamma, beta))
    ref_odd = falcon_layernorm_ref(x_odd, gamma, beta)
    assert out_odd.shape == (1, 50, H)
    assert jnp.allclose(out_odd, ref_odd, atol=1e-4, rtol=1e-4), "tail mismatch"

    # bf16 activations (what real Falcon-40B uses) exercise the 16-row
    # sublane-aligned tile path; stats are still computed in f32.
    x_bf16 = jax.random.normal(kx3, (2, 40, H), dtype=jnp.bfloat16)
    out_bf16 = jax.block_until_ready(
        falcon_layernorm(x_bf16, gamma.astype(jnp.bfloat16),
                         beta.astype(jnp.bfloat16)))
    ref_bf16 = falcon_layernorm_ref(x_bf16, gamma.astype(jnp.bfloat16),
                                    beta.astype(jnp.bfloat16))
    assert out_bf16.shape == (2, 40, H)
    assert jnp.allclose(out_bf16.astype(jnp.float32),
                        ref_bf16.astype(jnp.float32),
                        atol=3e-2, rtol=3e-2), "bf16 mismatch"

    print("KERNEL_OK")
</pallas_src>

<mosaic_0001>
module attributes {stable_mosaic.version = 11 : i64} {
  func.func @_layernorm_kernel(%arg0: i32, %arg1: memref<16x128xf32, #tpu.memory_space<vmem>>, %arg2: memref<1x128xf32, #tpu.memory_space<vmem>>, %arg3: memref<1x128xf32, #tpu.memory_space<vmem>>, %arg4: memref<16x128xf32, #tpu.memory_space<vmem>>) attributes {dimension_semantics = [#tpu.dimension_semantics<parallel>], iteration_bounds = array<i64: 4>, scalar_prefetch = 0 : i64, scratch_operands = 0 : i64, tpu.core_type = #tpu.core_type<tc>, window_params = [{transform_indices = @transform_0, window_bounds = array<i64: 16, 128>}, {pipeline_mode = #tpu.pipeline_mode<synchronous>, transform_indices = @transform_1, window_bounds = array<i64: 1, 128>}, {pipeline_mode = #tpu.pipeline_mode<synchronous>, transform_indices = @transform_2, window_bounds = array<i64: 1, 128>}, {transform_indices = @transform_3, window_bounds = array<i64: 16, 128>}]} {
    %c0 = arith.constant 0 : index
    %c0_0 = arith.constant 0 : index
    %0 = vector.load %arg1[%c0, %c0_0] : memref<16x128xf32, #tpu.memory_space<vmem>>, vector<16x128xf32>
    %cst = arith.constant dense<0.000000e+00> : vector<16xf32>
    %1 = vector.multi_reduction <add>, %0, %cst [1] : vector<16x128xf32> to vector<16xf32>
    %2 = vector.shape_cast %1 : vector<16xf32> to vector<16x1xf32>
    %3 = arith.mulf %0, %0 : vector<16x128xf32>
    %cst_1 = arith.constant dense<0.000000e+00> : vector<16xf32>
    %4 = vector.multi_reduction <add>, %3, %cst_1 [1] : vector<16x128xf32> to vector<16xf32>
    %5 = vector.shape_cast %4 : vector<16xf32> to vector<16x1xf32>
    %cst_2 = arith.constant 7.812500e-03 : f32
    %6 = vector.broadcast %cst_2 : f32 to vector<16x1xf32>
    %7 = arith.mulf %2, %6 : vector<16x1xf32>
    %cst_3 = arith.constant 7.812500e-03 : f32
    %8 = vector.broadcast %cst_3 : f32 to vector<16x1xf32>
    %9 = arith.mulf %5, %8 : vector<16x1xf32>
    %10 = arith.mulf %7, %7 : vector<16x1xf32>
    %11 = arith.subf %9, %10 : vector<16x1xf32>
    %cst_4 = arith.constant 0.000000e+00 : f32
    %12 = vector.broadcast %cst_4 : f32 to vector<16x1xf32>
    %13 = arith.maximumf %11, %12 : vector<16x1xf32>
    %cst_5 = arith.constant 9.99999974E-6 : f32
    %14 = vector.broadcast %cst_5 : f32 to vector<16x1xf32>
    %15 = arith.addf %13, %14 : vector<16x1xf32>
    %16 = math.rsqrt %15 : vector<16x1xf32>
    %c0_6 = arith.constant 0 : index
    %c0_7 = arith.constant 0 : index
    %17 = vector.load %arg2[%c0_6, %c0_7] : memref<1x128xf32, #tpu.memory_space<vmem>>, vector<1x128xf32>
    %c0_8 = arith.constant 0 : index
    %c0_9 = arith.constant 0 : index
    %18 = vector.load %arg3[%c0_8, %c0_9] : memref<1x128xf32, #tpu.memory_space<vmem>>, vector<1x128xf32>
    %19 = vector.broadcast %7 : vector<16x1xf32> to vector<16x128xf32>
    %20 = arith.subf %0, %19 : vector<16x128xf32>
    %21 = vector.broadcast %16 : vector<16x1xf32> to vector<16x128xf32>
    %22 = arith.mulf %20, %21 : vector<16x128xf32>
    %23 = vector.broadcast %17 : vector<1x128xf32> to vector<16x128xf32>
    %24 = arith.mulf %22, %23 : vector<16x128xf32>
    %25 = vector.broadcast %18 : vector<1x128xf32> to vector<16x128xf32>
    %26 = arith.addf %24, %25 : vector<16x128xf32>
    %c0_10 = arith.constant 0 : index
    %c0_11 = arith.constant 0 : index
    %27 = vector.load %arg4[%c0_10, %c0_11] : memref<16x128xf32, #tpu.memory_space<vmem>>, vector<16x128xf32>
    tpu.vector_store %arg4[%c0_10, %c0_11], %26 {strides = array<i32>} : memref<16x128xf32, #tpu.memory_space<vmem>>, vector<16x128xf32>,
    return
  }
  func.func @transform_0(%arg0: i32) -> (i32, i32) {
    %c0_i32 = arith.constant 0 : i32
    %c0_i32_0 = arith.constant 0 : i32
    return %arg0, %c0_i32 : i32, i32
  }
  func.func @transform_1(%arg0: i32) -> (i32, i32) {
    %c0_i32 = arith.constant 0 : i32
    %c0_i32_0 = arith.constant 0 : i32
    %c0_i32_1 = arith.constant 0 : i32
    return %c0_i32, %c0_i32_0 : i32, i32
  }
  func.func @transform_2(%arg0: i32) -> (i32, i32) {
    %c0_i32 = arith.constant 0 : i32
    %c0_i32_0 = arith.constant 0 : i32
    %c0_i32_1 = arith.constant 0 : i32
    return %c0_i32, %c0_i32_0 : i32, i32
  }
  func.func @transform_3(%arg0: i32) -> (i32, i32) {
    %c0_i32 = arith.constant 0 : i32
    %c0_i32_0 = arith.constant 0 : i32
    return %arg0, %c0_i32 : i32, i32
  }
}

</mosaic_0001>

<llo_original>
// kernel: tpu_custom_call.1
$region0: #{tpu_custom_call.1}
  #allocation0 [shape = 'u32[]', space=smem, size = 0x4, offset = 0x4, fixed_abs, tag = 'smem constant byte address 0x4 - core index']
  #allocation1 [shape = 'u32[144,128]{1,0:T(1,128)}', space=vmem, size = 0x12000, scoped, tag = 'internal scratch']
  %s0 = inlined_call_operand.hbm [shape: f32[64,128], index: 0, kind: input, shape index: {}]
  %s1 = inlined_call_operand.vmem [shape: f32[1,128], index: 1, kind: input, shape index: {}]
  %s2 = inlined_call_operand.vmem [shape: f32[1,128], index: 2, kind: input, shape index: {}]
  %s3 = inlined_call_operand.hbm [shape: f32[64,128], index: 3, kind: output, shape index: {}]
  %s4 = sld [smem:[#allocation0]]
  $region49: #{tpu_custom_call.1} parent=0
    _
  %s6 = ssub.s32 1, %s4
  %s7 = scalar_select 0, %s6, %s4
  $region1: #{tpu_custom_call.1} parent=0
    #allocation2 [shape = 'u8[16384]{0}', space=vmem, size = 0x4000, scoped, tag = 'input window, operand 0']
    #allocation3 [shape = 's32[2]{0}', space=sflag, size = 0x8, scoped, tag = 'scoped memory for tpu_custom_call.1']
    #allocation4 [shape = 's32[2]{0}', space=sflag, size = 0x8, scoped, tag = 'scoped memory for tpu_custom_call.1']
    #allocation5 [shape = 'u8[16384]{0}', space=vmem, size = 0x4000, scoped, tag = 'output window, operand 0']
    %8 = vsyncpa [#allocation3], 0
    %s9 = scalar_lea.sflag [#allocation3], 1
    %10 = vsyncpa %s9, 0
    %11 = vsyncpa [#allocation4], 0
    %s12 = scalar_lea.sflag [#allocation4], 1
    %13 = vsyncpa %s12, 0
    loop: start=0, step=1, limit=6
    $region2: #{tpu_custom_call.1} parent=1 // loop_pre_header
      _
    $region3: #{tpu_custom_call.1} parent=1 // loop_header
      %s15 = sphi 0, %s19
      %p16 = scmp.ge.s32.totalorder %s15, 6
      %s25 = sphi 0, %s27
      %s28 = sphi 0, %s25
      %s29 = sphi 0, %s28
      %s45 = sphi 0, %s29
      %s49 = sphi 0, %s49
      %s51 = sphi 0, %s49
      %s52 = sphi 0, %s51
      %s66 = sphi 0, %s52
      %s70 = sphi 0, %s70
      %s72 = sphi 0, %s70
      %s73 = sphi 0, %s72
      %s87 = sphi 0, %s73
      %s93 = sphi 0, %s95
      %s96 = sphi 0, %s93
      %s97 = sphi 0, %s96
      %s113 = sphi 0, %s97
    $region4: #{tpu_custom_call.1} parent=1 // loop_header_branch
      %18 = sbr.rel (%p16) target = $region8
    $region5: #{tpu_custom_call.1} parent=1 // loop_body
      %s20 = ssub.s32 %s15, 1
      %s21 = ssub.s32 %s15, 2
      %s22 = sadd.s32 %s15, 1
      %s23 = ssub.s32 %s15, %s22
      %p24 = scmp.eq.s32.totalorder %s23, 0
      %s26 = sadd.s32 %s25, 1
      %s27 = scalar_select %p24, %s25, %s26
      %p30 = pneg %p24
      %p31 = scmp.eq.s32.totalorder %s15, 3
      %p32 = por %p30, %p31
      %p33 = scmp.ne.s32.totalorder %s25, %s28
      %p34 = scmp.eq.s32.totalorder %s15, 0
      %p35 = por %p33, %p34
      %p36 = scmp.ne.s32.totalorder %s25, %s28
      %p37 = scmp.eq.s32.totalorder %s20, 3
      %p38 = por %p36, %p37
      %p39 = scmp.ne.s32.totalorder %s28, %s29
      %p40 = scmp.eq.s32.totalorder %s20, 0
      %p41 = por %p39, %p40
      %p42 = scmp.ne.s32.totalorder %s28, %s29
      %p43 = scmp.eq.s32.totalorder %s21, 3
      %p44 = por %p42, %p43
      %p46 = scmp.ne.s32.totalorder %s29, %s45
      %p47 = scmp.eq.s32.totalorder %s21, 0
      %p48 = por %p46, %p47
      %s50 = sadd.s32 %s49, 1
      %p53 = scmp.eq.s32.totalorder %s15, 3
      %p54 = scmp.ne.s32.totalorder %s49, %s51
      %p55 = scmp.eq.s32.totalorder %s15, 0
      %p56 = por %p54, %p55
      %p57 = scmp.ne.s32.totalorder %s49, %s51
      %p58 = scmp.eq.s32.totalorder %s20, 3
      %p59 = por %p57, %p58
      %p60 = scmp.ne.s32.totalorder %s51, %s52
      %p61 = scmp.eq.s32.totalorder %s20, 0
      %p62 = por %p60, %p61
      %p63 = scmp.ne.s32.totalorder %s51, %s52
      %p64 = scmp.eq.s32.totalorder %s21, 3
      %p65 = por %p63, %p64
      %p67 = scmp.ne.s32.totalorder %s52, %s66
      %p68 = scmp.eq.s32.totalorder %s21, 0
      %p69 = por %p67, %p68
      %s71 = sadd.s32 %s70, 1
      %p74 = scmp.eq.s32.totalorder %s15, 3
      %p75 = scmp.ne.s32.totalorder %s70, %s72
      %p76 = scmp.eq.s32.totalorder %s15, 0
      %p77 = por %p75, %p76
      %p78 = scmp.ne.s32.totalorder %s70, %s72
      %p79 = scmp.eq.s32.totalorder %s20, 3
      %p80 = por %p78, %p79
      %p81 = scmp.ne.s32.totalorder %s72, %s73
      %p82 = scmp.eq.s32.totalorder %s20, 0
      %p83 = por %p81, %p82
      %p84 = scmp.ne.s32.totalorder %s72, %s73
      %p85 = scmp.eq.s32.totalorder %s21, 3
      %p86 = por %p84, %p85
      %p88 = scmp.ne.s32.totalorder %s73, %s87
      %p89 = scmp.eq.s32.totalorder %s21, 0
      %p90 = por %p88, %p89
      %s91 = ssub.s32 %s15, %s22
      %p92 = scmp.eq.s32.totalorder %s91, 0
      %s94 = sadd.s32 %s93, 1
      %s95 = scalar_select %p92, %s93, %s94
      %p98 = pneg %p92
      %p99 = scmp.eq.s32.totalorder %s15, 3
      %p100 = por %p98, %p99
      %p101 = scmp.ne.s32.totalorder %s93, %s96
      %p102 = scmp.eq.s32.totalorder %s15, 0
      %p103 = por %p101, %p102
      %p104 = scmp.ne.s32.totalorder %s93, %s96
      %p105 = scmp.eq.s32.totalorder %s20, 3
      %p106 = por %p104, %p105
      %p107 = scmp.ne.s32.totalorder %s96, %s97
      %p108 = scmp.eq.s32.totalorder %s20, 0
      %p109 = por %p107, %p108
      %p110 = scmp.ne.s32.totalorder %s96, %s97
      %p111 = scmp.eq.s32.totalorder %s21, 3
      %p112 = por %p110, %p111
      %p114 = scmp.ne.s32.totalorder %s97, %s113
      %p115 = scmp.eq.s32.totalorder %s21, 0
      %p116 = por %p114, %p115
      %p117 = scmp.le.s32.totalorder 1, %s15
      %p118 = scmp.lt.s32.totalorder %s15, 5
      %p119 = pnand %p117, %p118
      %p120 = pneg %p119
      // Predicated region
      $region9: #{tpu_custom_call.1} parent=5 // pred_check
        _
      $region10: #{tpu_custom_call.1} parent=5 // pred_check_branch
        %122 = sbr.rel (%p119) target = $region12
      $region11: #{tpu_custom_call.1} parent=5 // pred_region
        %s123 = ssub.s32 %s15, 1
        // Predicated region
        $region13: #{tpu_custom_call.1} parent=11 // pred_check
          %p124 = pneg %p62
        $region14: #{tpu_custom_call.1} parent=11 // pred_check_branch
          %126 = sbr.rel (%p124) target = $region16
        $region15: #{tpu_custom_call.1} parent=11 // pred_region
          _
        $region16: #{tpu_custom_call.1} parent=11 // pred_fallthru
          _
        // Predicated region
        $region17: #{tpu_custom_call.1} parent=11 // pred_check
          %p127 = pneg %p83
        $region18: #{tpu_custom_call.1} parent=11 // pred_check_branch
          %129 = sbr.rel (%p127) target = $region20
        $region19: #{tpu_custom_call.1} parent=11 // pred_region
          _
        $region20: #{tpu_custom_call.1} parent=11 // pred_fallthru
          _
      $region12: #{tpu_custom_call.1} parent=5 // pred_fallthru
        _
      %p130 = scmp.lt.s32.totalorder %s15, 4
      // Predicated region
      $region21: #{tpu_custom_call.1} parent=5 // pred_check
        %p131 = pneg %p130
      $region22: #{tpu_custom_call.1} parent=5 // pred_check_branch
        %133 = sbr.rel (%p131) target = $region24
      $region23: #{tpu_custom_call.1} parent=5 // pred_region
        // Predicated region
        $region25: #{tpu_custom_call.1} parent=23 // pred_check
          %p134 = pneg %p35
        $region26: #{tpu_custom_call.1} parent=23 // pred_check_branch
          %136 = sbr.rel (%p134) target = $region28
        $region27: #{tpu_custom_call.1} parent=23 // pred_region
          %s137 = sand.u32 %s25, 1
          %s138 = scalar_lea.sflag [#allocation3], %s137
          %s139 = sand.u32 %s25, 1
          %s140 = smul.addr %s139, 16
          %s141 = scalar_lea.vmem [#allocation2], %s140
          %s142 = smul.u32 2, %s15
          %s144 = ssub.s32 256, 256
          %145 = vsyncadd %s138, %s144
          %s146 = smul.addr %s142, 128
          %s147 = scalar_lea.hbm %s0, %s146
          %s148 = sshll.u32 %s141, 4
          %s149 = int_to_ptr.vmem [resolvable:$true] %s148
          %154 = dma.hbm_to_vmem [thread:$0]  %s147, 256, %s149, %s138, 128, 128, 8
        $region28: #{tpu_custom_call.1} parent=23 // pred_fallthru
          _
      $region24: #{tpu_custom_call.1} parent=5 // pred_fallthru
        _
      %p155 = scmp.le.s32.totalorder 1, %s15
      %p156 = scmp.lt.s32.totalorder %s15, 5
      %p157 = pnand %p155, %p156
      %p158 = pneg %p157
      // Predicated region
      $region29: #{tpu_custom_call.1} parent=5 // pred_check
        _
      $region30: #{tpu_custom_call.1} parent=5 // pred_check_branch
        %160 = sbr.rel (%p157) target = $region32
      $region31: #{tpu_custom_call.1} parent=5 // pred_region
        %s161 = ssub.s32 %s15, 1
        %s162 = sand.u32 %s28, 1
        %s163 = scalar_lea.sflag [#allocation3], %s162
        %s164 = sand.u32 %s28, 1
        %s165 = smul.addr %s164, 16
        %s166 = scalar_lea.vmem [#allocation2], %s165
        // Predicated region
        $region33: #{tpu_custom_call.1} parent=31 // pred_check
          %p167 = pneg %p41
        $region34: #{tpu_custom_call.1} parent=31 // pred_check_branch
          %169 = sbr.rel (%p167) target = $region36
        $region35: #{tpu_custom_call.1} parent=31 // pred_region
          %170 = dma.done %s163, 256
        $region36: #{tpu_custom_call.1} parent=31 // pred_fallthru
          _
        %s171 = sand.u32 %s28, 1
        %s172 = scalar_lea.sflag [#allocation3], %s171
        %s173 = sand.u32 %s28, 1
        %s174 = smul.addr %s173, 16
        %s175 = scalar_lea.vmem [#allocation2], %s174
        %p176 = pneg %p41
        %p177 = pneg %p38
        %p178 = pneg %p62
        %p179 = pneg %p59
        %p180 = pneg %p83
        %p181 = pneg %p80
        %p182 = pneg %p109
        %p183 = pneg %p106
        %s184 = sand.u32 %s96, 1
        %s185 = scalar_lea.sflag [#allocation4], %s184
        %s186 = sand.u32 %s96, 1
        %s187 = smul.addr %s186, 16
        %s188 = scalar_lea.vmem [#allocation5], %s187
        %s189 = smul.u32 2, %s20
        %s190 = smul.u32 2, %s20
        %v191 = vld [vmem:[%s166] sm:$0xff]
        %v192 = vld [vmem:[%s166 + $0x8] sm:$0xff]
        %193 = vadd.xlane.f32.xlu0 %v191
        %v194 = vpop.xlane.xlu0 %193
        %195 = vadd.xlane.f32.xlu0 %v192
        %v196 = vpop.xlane.xlu0 %195
        %v197 = vmul.f32 %v191, %v191
        %v198 = vmul.f32 %v192, %v192
        %199 = vadd.xlane.f32.xlu0 %v197
        %v200 = vpop.xlane.xlu0 %199
        %201 = vadd.xlane.f32.xlu0 %v198
        %v202 = vpop.xlane.xlu0 %201
        %v203 = vmul.f32 %v194, 0.0078125
        %v204 = vmul.f32 %v196, 0.0078125
        %v205 = vmul.f32 %v200, 0.0078125
        %v206 = vmul.f32 %v202, 0.0078125
        %v207 = vmul.f32 %v203, %v203
        %v208 = vmul.f32 %v204, %v204
        %v209 = vsub.f32 %v205, %v207
        %v210 = vsub.f32 %v206, %v208
        %v211 = vmax.f32 %v209, 0.0
        %v212 = vmax.f32 %v210, 0.0
        %v213 = vadd.f32 %v211, 1e-05
        %v214 = vadd.f32 %v212, 1e-05
        %v215 = vrsqrt.pop %v213
        %v216 = vrsqrt.pop %v214
        %v217 = vld [vmem:[%s1] sm:$0x1]
        %v218 = vld [vmem:[%s2] sm:$0x1]
        %v219 = vsub.f32 %v191, %v203
        %v220 = vsub.f32 %v192, %v204
        %v221 = vmul.f32 %v219, %v215
        %v222 = vmul.f32 %v220, %v216
        %v224 = vlaneseq
        %v225 = vshrl.u32 %v224, 7
        %v226 = vsub.s32 0, %v225
        %v227 = vrot.slane %v217, %v226
        %v229 = vmul.f32 %v221, %v227
        %v230 = vmul.f32 %v222, %v227
        %v232 = vlaneseq
        %v233 = vshrl.u32 %v232, 7
        %v234 = vsub.s32 0, %v233
        %v235 = vrot.slane %v218, %v234
        %v237 = vadd.f32 %v229, %v235
        %v238 = vadd.f32 %v230, %v235
        %239 = vst [vmem:[%s188] sm:$0xff] %v237
        %240 = vst [vmem:[%s188 + $0x8] sm:$0xff] %v238
        %s241 = sand.u32 %s96, 1
        %s242 = scalar_lea.sflag [#allocation4], %s241
        %s243 = sand.u32 %s96, 1
        %s244 = smul.addr %s243, 16
        %s245 = scalar_lea.vmem [#allocation5], %s244
        // Predicated region
        $region37: #{tpu_custom_call.1} parent=31 // pred_check
          %p246 = pneg %p106
        $region38: #{tpu_custom_call.1} parent=31 // pred_check_branch
          %248 = sbr.rel (%p246) target = $region40
        $region39: #{tpu_custom_call.1} parent=31 // pred_region
          %s249 = smul.u32 2, %s20
          %s251 = ssub.s32 256, 256
          %252 = vsyncadd %s242, %s251
          %s253 = smul.addr %s249, 128
          %s254 = scalar_lea.hbm %s3, %s253
          %s255 = sshll.u32 %s245, 4
          %s256 = int_to_ptr.vmem [resolvable:$true] %s255
          %261 = dma.vmem_to_hbm [thread:$0]  %s256, 256, %s254, %s242, 128, 128, 8
        $region40: #{tpu_custom_call.1} parent=31 // pred_fallthru
          _
      $region32: #{tpu_custom_call.1} parent=5 // pred_fallthru
        _
      %p262 = scmp.le.s32.totalorder 2, %s15
      // Predicated region
      $region41: #{tpu_custom_call.1} parent=5 // pred_check
        %p263 = pneg %p262
      $region42: #{tpu_custom_call.1} parent=5 // pred_check_branch
        %265 = sbr.rel (%p263) target = $region44
      $region43: #{tpu_custom_call.1} parent=5 // pred_region
        %s266 = ssub.s32 %s15, 2
        // Predicated region
        $region45: #{tpu_custom_call.1} parent=43 // pred_check
          %p267 = pneg %p112
        $region46: #{tpu_custom_call.1} parent=43 // pred_check_branch
          %269 = sbr.rel (%p267) target = $region48
        $region47: #{tpu_custom_call.1} parent=43 // pred_region
          %s270 = sand.u32 %s97, 1
          %s271 = scalar_lea.sflag [#allocation4], %s270
          %s272 = sand.u32 %s97, 1
          %s273 = smul.addr %s272, 16
          %s274 = scalar_lea.vmem [#allocation5], %s273
          %275 = dma.done %s271, 256
        $region48: #{tpu_custom_call.1} parent=43 // pred_fallthru
          _
      $region44: #{tpu_custom_call.1} parent=5 // pred_fallthru
        _
    $region6: #{tpu_custom_call.1} parent=1 // loop_footer
      %s19 = sadd.s32 1, %s15
    $region7: #{tpu_custom_call.1} parent=1 // loop_footer_branch
      %14 = sbr.rel target = $region3
    $region8: #{tpu_custom_call.1} parent=1 // loop_exit
      _
    %276 = vsyncpa [#allocation3], 1
    %s277 = scalar_lea.sflag [#allocation3], 1
    %278 = vsyncpa %s277, 1
    %279 = vsyncpa [#allocation4], 1
    %s280 = scalar_lea.sflag [#allocation4], 1
    %281 = vsyncpa %s280, 1

</llo_original>
